<compile_context>
chip_gen: v6e
topology: v6e:2x2x1
jax: 0.10.0
libtpu: 0.0.40
codegen_flags: <defaults>
</compile_context>

<pallas_src>
import functools
import math

import jax
import jax.numpy as jnp
from jax import lax
from jax.experimental import pallas as pl
from jax.experimental.pallas import tpu as pltpu


def _flash_attn_kernel(q_ref, k_ref, v_ref, o_ref, m_scr, acc_scr, q_scr, *,
                       scale2):
    """One (batch, head, q-tile, kv-tile) grid step.

    q_ref: (1, C, tq)   k_ref/v_ref: (1, C, tkv)   o_ref: (1, C, tq)
    m_scr:   (1, tq)   f32 running max
    acc_scr: (C+1, tq) f32; rows 0..C-1 accumulate P@V^T, row C accumulates the
             softmax denominator (fused into the same MXU matmul).
    q_scr:   (C, tq)   MXU dtype; q pre-scaled & cast once per q tile.
    """
    kv = pl.program_id(3)
    mxu_dtype = q_scr.dtype
    ch = o_ref.shape[1]

    @pl.when(kv == 0)
    def _():
        m_scr[...] = jnp.full_like(m_scr, -jnp.inf)
        acc_scr[...] = jnp.zeros_like(acc_scr)
        # Both ch**-0.25 factors folded into q; scale+cast hoisted out of the
        # kv loop (q block is resident across the kv axis).
        q_scr[...] = (q_ref[0] * scale2).astype(mxu_dtype)

    q = q_scr[...]                               # (C, tq)   mxu dtype
    k = k_ref[0].astype(mxu_dtype)               # (C, tkv)
    v = v_ref[0].astype(mxu_dtype)               # (C, tkv)

    # logits[s, t] = sum_c k[c, s] * q[c, t] -> (tkv, tq); f32 MXU accumulation.
    s = lax.dot_general(k, q, (((0,), (0,)), ((), ())),
                        preferred_element_type=jnp.float32)

    m_prev = m_scr[...]                                               # (1, tq)
    m_new = jnp.maximum(m_prev, jnp.max(s, axis=0, keepdims=True))    # (1, tq)
    alpha = jnp.exp(m_prev - m_new)                                   # (1, tq)
    p = jnp.exp(s - m_new)                                            # (tkv, tq) f32

    # Append a row of ones to V so a single MXU matmul produces both P@V^T
    # (rows 0..C-1) and the softmax denominator sum_s p (row C); this removes
    # the per-step tkv*tq row-sum from the VPU/XLU.
    ones_row = jnp.ones((1, v.shape[1]), dtype=mxu_dtype)
    v_ext = jnp.concatenate([v, ones_row], axis=0)                    # (C+1, tkv)
    pv = lax.dot_general(v_ext, p.astype(mxu_dtype), (((1,), (0,)), ((), ())),
                         preferred_element_type=jnp.float32)          # (C+1, tq)

    acc_scr[...] = alpha * acc_scr[...] + pv
    m_scr[...] = m_new

    @pl.when(kv == pl.num_programs(3) - 1)
    def _():
        acc = acc_scr[...]
        inv_l = pl.reciprocal(acc[ch:ch + 1, :], approx=True)         # (1, tq)
        o_ref[0] = (acc[:ch, :] * inv_l).astype(o_ref.dtype)


def _vmem_limit_bytes():
    """Per-generation scoped-VMEM limit: ~3/4 of physical, capped at 96 MiB.

    v5e/v6e (128 MiB physical) -> 96 MiB; v7x (64 MiB physical) -> 48 MiB.
    Falls back to the most conservative value if the query is unavailable.
    """
    cap = None
    try:
        cap = getattr(pltpu.get_tpu_info(), "vmem_capacity_bytes", None)
    except Exception:
        cap = None
    if not cap:
        cap = 64 * 1024 * 1024
    return int(min(cap * 3 // 4, 96 * 1024 * 1024))


def _tile_candidates(length, cap):
    """Multiples of 128 dividing `length`, descending, capped; whole-T fallback."""
    cands = [t for t in range(128, min(length, cap) + 1, 128) if length % t == 0]
    cands.sort(reverse=True)
    if not cands:
        # TODO(synk): masked tail tiles for large T with no 128-divisor; this
        # fallback materializes full (T, T) logits in VMEM for awkward T.
        cands = [length]
    return cands


def _estimate_vmem_bytes(ch, tq, tkv, in_bytes, out_bytes, mxu_bytes):
    blocks = 2 * ch * tq * in_bytes           # q block, double-buffered
    blocks += 2 * 2 * ch * tkv * in_bytes     # k, v blocks, double-buffered
    blocks += 2 * ch * tq * out_bytes         # out block, double-buffered
    scratch = 4 * tq + 4 * (ch + 1) * tq + mxu_bytes * ch * tq
    interm = (2 * 4 + mxu_bytes) * tkv * tq + 4 * (ch + 1) * tq   # s, p, p_bf16, pv
    return blocks + scratch + interm


def _pick_tiles(length, ch, in_bytes, out_bytes, mxu_bytes, budget, min_q_tiles):
    cap_q = length
    if min_q_tiles > 1:
        cap_q = max(128, length // min_q_tiles)   # keep >=2 q tiles (v7x 2 TCs)
    tq_cands = _tile_candidates(length, min(1024, cap_q))
    tkv_cands = _tile_candidates(length, 1024)
    for tq in tq_cands:            # prefer large tq first: cuts K/V HBM re-reads
        for tkv in tkv_cands:
            if _estimate_vmem_bytes(ch, tq, tkv, in_bytes, out_bytes,
                                    mxu_bytes) <= budget:
                return tq, tkv
    return tq_cands[-1], tkv_cands[-1]


def qkv_attention(qkv, n_heads, *, tq=None, tkv=None):
    """qkv: [N, 3*H*C, T] -> [N, H*C, T]; same semantics as the torch module."""
    bs, width, length = qkv.shape
    assert width % (3 * n_heads) == 0
    ch = width // (3 * n_heads)
    # torch module scales q and k each by ch**-0.25; fold both into q.
    scale2 = 1.0 / math.sqrt(ch)

    in_dtype = qkv.dtype
    mxu_dtype = jnp.bfloat16 if in_dtype == jnp.float32 else in_dtype
    out_dtype = in_dtype

    vmem_limit = _vmem_limit_bytes()
    if tq is None or tkv is None:
        auto_tq, auto_tkv = _pick_tiles(
            length, ch,
            in_bytes=jnp.dtype(in_dtype).itemsize,
            out_bytes=jnp.dtype(out_dtype).itemsize,
            mxu_bytes=jnp.dtype(mxu_dtype).itemsize,
            budget=int(vmem_limit * 0.7),
            min_q_tiles=2 if bs * n_heads < 2 else 1)
        tq = auto_tq if tq is None else tq
        tkv = auto_tkv if tkv is None else tkv
    assert length % tq == 0 and length % tkv == 0, (length, tq, tkv)

    # Free, layout-preserving view (no HBM copy): split the channel dim so one
    # head's q/k/v slab is a whole (ch, T) slice selectable by the index_maps.
    # chunk(3, dim=1) order => head h of q/k/v sits at leading index
    # n*3H + {0,H,2H} + h.
    qkv_r = qkv.reshape(bs * 3 * n_heads, ch, length)

    H = n_heads
    q_spec = pl.BlockSpec((1, ch, tq),
                          lambda n, h, i, j: (n * 3 * H + h, 0, i))
    # If xprof shows exposed DMA, add pipeline_mode=pl.Buffered(3) to k/v specs.
    k_spec = pl.BlockSpec((1, ch, tkv),
                          lambda n, h, i, j: (n * 3 * H + H + h, 0, j))
    v_spec = pl.BlockSpec((1, ch, tkv),
                          lambda n, h, i, j: (n * 3 * H + 2 * H + h, 0, j))
    o_spec = pl.BlockSpec((1, ch, tq),
                          lambda n, h, i, j: (n * H + h, 0, i))

    kernel = functools.partial(_flash_attn_kernel, scale2=scale2)

    out = pl.pallas_call(
        kernel,
        out_shape=jax.ShapeDtypeStruct((bs * n_heads, ch, length), out_dtype),
        grid_spec=pltpu.PrefetchScalarGridSpec(
            num_scalar_prefetch=0,
            grid=(bs, n_heads, length // tq, length // tkv),
            in_specs=[q_spec, k_spec, v_spec],
            out_specs=o_spec,
            scratch_shapes=[
                pltpu.VMEM((1, tq), jnp.float32),        # running max m
                pltpu.VMEM((ch + 1, tq), jnp.float32),   # acc + fused denominator
                pltpu.VMEM((ch, tq), mxu_dtype),         # pre-scaled / cast q
            ],
        ),
        compiler_params=pltpu.CompilerParams(
            dimension_semantics=("parallel", "parallel", "parallel", "arbitrary"),
            vmem_limit_bytes=vmem_limit,
        ),
    )(qkv_r, qkv_r, qkv_r)   # same buffer, three tilings (no copies)

    return out.reshape(bs, n_heads * ch, length)


def _reference(qkv, n_heads):
    bs, width, length = qkv.shape
    ch = width // (3 * n_heads)
    q, k, v = jnp.split(qkv, 3, axis=1)
    scale = 1.0 / math.sqrt(math.sqrt(ch))
    q = (q.reshape(bs * n_heads, ch, length) * scale).astype(jnp.float32)
    k = (k.reshape(bs * n_heads, ch, length) * scale).astype(jnp.float32)
    v = v.reshape(bs * n_heads, ch, length).astype(jnp.float32)
    w = jnp.einsum("bct,bcs->bts", q, k)
    w = jax.nn.softmax(w, axis=-1)
    a = jnp.einsum("bts,bcs->bct", w, v)
    return a.reshape(bs, -1, length).astype(qkv.dtype)


if __name__ == "__main__":
    key = jax.random.PRNGKey(0)
    k_small, k_tiled = jax.random.split(key)

    # bf16 MXU operands + approx reciprocal => slightly looser tolerances vs
    # the f32 reference (softmax stats / accumulation stay f32).
    ATOL = RTOL = 2e-2

    # Small demo shape matching the module: qkv width = 3 * H * C.
    n_heads, N, C, T = 2, 2, 8, 16
    qkv = jax.random.normal(k_small, (N, 3 * n_heads * C, T), dtype=jnp.float32)
    out = jax.block_until_ready(qkv_attention(qkv, n_heads))
    ref = _reference(qkv, n_heads)
    assert out.shape == (N, n_heads * C, T), out.shape
    assert jnp.allclose(out, ref, atol=ATOL, rtol=RTOL), "mismatch (small)"

    # Multi-tile flash path (2 q-tiles x 2 kv-tiles) with explicit tiles.
    n_heads2, N2, C2, T2 = 2, 1, 16, 256
    qkv2 = jax.random.normal(k_tiled, (N2, 3 * n_heads2 * C2, T2),
                             dtype=jnp.float32)
    out2 = jax.block_until_ready(qkv_attention(qkv2, n_heads2, tq=128, tkv=128))
    ref2 = _reference(qkv2, n_heads2)
    assert out2.shape == (N2, n_heads2 * C2, T2), out2.shape
    assert jnp.allclose(out2, ref2, atol=ATOL, rtol=RTOL), "mismatch (tiled)"

    # Auto tile selection path (VMEM-budgeted) on the same inputs.
    out3 = jax.block_until_ready(qkv_attention(qkv2, n_heads2))
    assert jnp.allclose(out3, ref2, atol=ATOL, rtol=RTOL), "mismatch (auto)"

    print("KERNEL_OK")
</pallas_src>

<mosaic_0001>
module attributes {stable_mosaic.version = 11 : i64} {
  func.func @_flash_attn_kernel(%arg0: i32, %arg1: i32, %arg2: i32, %arg3: i32, %arg4: memref<1x8x16xf32, #tpu.memory_space<vmem>>, %arg5: memref<1x8x16xf32, #tpu.memory_space<vmem>>, %arg6: memref<1x8x16xf32, #tpu.memory_space<vmem>>, %arg7: memref<1x8x16xf32, #tpu.memory_space<vmem>>, %arg8: memref<1x16xf32, #tpu.memory_space<vmem>>, %arg9: memref<9x16xf32, #tpu.memory_space<vmem>>, %arg10: memref<8x16xbf16, #tpu.memory_space<vmem>>) attributes {dimension_semantics = [#tpu.dimension_semantics<parallel>, #tpu.dimension_semantics<parallel>, #tpu.dimension_semantics<parallel>, #tpu.dimension_semantics<arbitrary>], iteration_bounds = array<i64: 2, 2, 1, 1>, scalar_prefetch = 0 : i64, scratch_operands = 3 : i64, tpu.core_type = #tpu.core_type<tc>, window_params = [{transform_indices = @transform_0, window_bounds = array<i64: 1, 8, 16>}, {transform_indices = @transform_1, window_bounds = array<i64: 1, 8, 16>}, {transform_indices = @transform_2, window_bounds = array<i64: 1, 8, 16>}, {transform_indices = @transform_3, window_bounds = array<i64: 1, 8, 16>}]} {
    %c0_i32 = arith.constant 0 : i32
    %0 = arith.cmpi eq, %arg3, %c0_i32 : i32
    %1 = arith.extui %0 : i1 to i32
    %c0_i32_0 = arith.constant 0 : i32
    %2 = arith.cmpi ne, %1, %c0_i32_0 : i32
    scf.if %2 {
      %cst_21 = arith.constant 0xFF800000 : f32
      %33 = vector.broadcast %cst_21 : f32 to vector<1x16xf32>
      %c0_22 = arith.constant 0 : index
      %c0_23 = arith.constant 0 : index
      %34 = vector.load %arg8[%c0_22, %c0_23] : memref<1x16xf32, #tpu.memory_space<vmem>>, vector<1x16xf32>
      tpu.vector_store %arg8[%c0_22, %c0_23], %33 {strides = array<i32>} : memref<1x16xf32, #tpu.memory_space<vmem>>, vector<1x16xf32>,
      %cst_24 = arith.constant 0.000000e+00 : f32
      %35 = vector.broadcast %cst_24 : f32 to vector<9x16xf32>
      %c0_25 = arith.constant 0 : index
      %c0_26 = arith.constant 0 : index
      %36 = vector.load %arg9[%c0_25, %c0_26] : memref<9x16xf32, #tpu.memory_space<vmem>>, vector<9x16xf32>
      tpu.vector_store %arg9[%c0_25, %c0_26], %35 {strides = array<i32>} : memref<9x16xf32, #tpu.memory_space<vmem>>, vector<9x16xf32>,
      %c0_27 = arith.constant 0 : index
      %c0_28 = arith.constant 0 : index
      %c0_29 = arith.constant 0 : index
      %37 = vector.load %arg4[%c0_27, %c0_28, %c0_29] : memref<1x8x16xf32, #tpu.memory_space<vmem>>, vector<1x8x16xf32>
      %38 = vector.shape_cast %37 : vector<1x8x16xf32> to vector<8x16xf32>
      %cst_30 = arith.constant 0.353553385 : f32
      %39 = vector.broadcast %cst_30 : f32 to vector<8x16xf32>
      %40 = arith.mulf %38, %39 : vector<8x16xf32>
      %41 = arith.truncf %40 : vector<8x16xf32> to vector<8x16xbf16>
      %c0_31 = arith.constant 0 : index
      %c0_32 = arith.constant 0 : index
      %42 = vector.load %arg10[%c0_31, %c0_32] : memref<8x16xbf16, #tpu.memory_space<vmem>>, vector<8x16xbf16>
      tpu.vector_store %arg10[%c0_31, %c0_32], %41 {strides = array<i32>} : memref<8x16xbf16, #tpu.memory_space<vmem>>, vector<8x16xbf16>,
    } else {
    }
    %c0 = arith.constant 0 : index
    %c0_1 = arith.constant 0 : index
    %3 = vector.load %arg10[%c0, %c0_1] : memref<8x16xbf16, #tpu.memory_space<vmem>>, vector<8x16xbf16>
    %c0_2 = arith.constant 0 : index
    %c0_3 = arith.constant 0 : index
    %c0_4 = arith.constant 0 : index
    %4 = vector.load %arg5[%c0_2, %c0_3, %c0_4] : memref<1x8x16xf32, #tpu.memory_space<vmem>>, vector<1x8x16xf32>
    %5 = vector.shape_cast %4 : vector<1x8x16xf32> to vector<8x16xf32>
    %6 = arith.truncf %5 : vector<8x16xf32> to vector<8x16xbf16>
    %c0_5 = arith.constant 0 : index
    %c0_6 = arith.constant 0 : index
    %c0_7 = arith.constant 0 : index
    %7 = vector.load %arg6[%c0_5, %c0_6, %c0_7] : memref<1x8x16xf32, #tpu.memory_space<vmem>>, vector<1x8x16xf32>
    %8 = vector.shape_cast %7 : vector<1x8x16xf32> to vector<8x16xf32>
    %9 = arith.truncf %8 : vector<8x16xf32> to vector<8x16xbf16>
    %cst = arith.constant dense<0.000000e+00> : vector<16x16xf32>
    %10 = tpu.matmul %6, %3, %cst {dimension_numbers = #tpu.dot_dimension_numbers<[0], [0], [1], [1], [0, 1, 1, 1], [], []>} : vector<8x16xbf16>, vector<8x16xbf16>, vector<16x16xf32> -> vector<16x16xf32>
    %c0_8 = arith.constant 0 : index
    %c0_9 = arith.constant 0 : index
    %11 = vector.load %arg8[%c0_8, %c0_9] : memref<1x16xf32, #tpu.memory_space<vmem>>, vector<1x16xf32>
    %cst_10 = arith.constant dense<0xFF800000> : vector<16xf32>
    %12 = vector.multi_reduction <maximumf>, %10, %cst_10 [0] : vector<16x16xf32> to vector<16xf32>
    %13 = vector.shape_cast %12 : vector<16xf32> to vector<1x16xf32>
    %14 = arith.maximumf %11, %13 : vector<1x16xf32>
    %15 = arith.subf %11, %14 : vector<1x16xf32>
    %16 = math.exp %15 : vector<1x16xf32>
    %17 = vector.broadcast %14 : vector<1x16xf32> to vector<16x16xf32>
    %18 = arith.subf %10, %17 : vector<16x16xf32>
    %19 = math.exp %18 : vector<16x16xf32>
    %cst_11 = arith.constant 1.000000e+00 : bf16
    %20 = vector.broadcast %cst_11 : bf16 to vector<1x16xbf16>
    %21 = tpu.concatenate %9, %20 in 0 : vector<8x16xbf16>, vector<1x16xbf16> -> vector<9x16xbf16>
    %22 = arith.truncf %19 : vector<16x16xf32> to vector<16x16xbf16>
    %cst_12 = arith.constant dense<0.000000e+00> : vector<9x16xf32>
    %23 = tpu.matmul %21, %22, %cst_12 {dimension_numbers = #tpu.dot_dimension_numbers<[1], [0], [0], [1], [0, 0, 1, 1], [], []>} : vector<9x16xbf16>, vector<16x16xbf16>, vector<9x16xf32> -> vector<9x16xf32>
    %c0_13 = arith.constant 0 : index
    %c0_14 = arith.constant 0 : index
    %24 = vector.load %arg9[%c0_13, %c0_14] : memref<9x16xf32, #tpu.memory_space<vmem>>, vector<9x16xf32>
    %25 = vector.broadcast %16 : vector<1x16xf32> to vector<9x16xf32>
    %26 = arith.mulf %25, %24 : vector<9x16xf32>
    %27 = arith.addf %26, %23 : vector<9x16xf32>
    %c0_15 = arith.constant 0 : index
    %c0_16 = arith.constant 0 : index
    %28 = vector.load %arg9[%c0_15, %c0_16] : memref<9x16xf32, #tpu.memory_space<vmem>>, vector<9x16xf32>
    tpu.vector_store %arg9[%c0_15, %c0_16], %27 {strides = array<i32>} : memref<9x16xf32, #tpu.memory_space<vmem>>, vector<9x16xf32>,
    %c0_17 = arith.constant 0 : index
    %c0_18 = arith.constant 0 : index
    %29 = vector.load %arg8[%c0_17, %c0_18] : memref<1x16xf32, #tpu.memory_space<vmem>>, vector<1x16xf32>
    tpu.vector_store %arg8[%c0_17, %c0_18], %14 {strides = array<i32>} : memref<1x16xf32, #tpu.memory_space<vmem>>, vector<1x16xf32>,
    %c0_i32_19 = arith.constant 0 : i32
    %30 = arith.cmpi eq, %arg3, %c0_i32_19 : i32
    %31 = arith.extui %30 : i1 to i32
    %c0_i32_20 = arith.constant 0 : i32
    %32 = arith.cmpi ne, %31, %c0_i32_20 : i32
    scf.if %32 {
      %c0_21 = arith.constant 0 : index
      %c0_22 = arith.constant 0 : index
      %33 = vector.load %arg9[%c0_21, %c0_22] : memref<9x16xf32, #tpu.memory_space<vmem>>, vector<9x16xf32>
      %34 = vector.extract_strided_slice %33 {offsets = [8, 0], sizes = [1, 16], strides = [1, 1]} : vector<9x16xf32> to vector<1x16xf32>
      %35 = tpu.reciprocal %34 {approx = true} : vector<1x16xf32> -> vector<1x16xf32>
      %36 = vector.extract_strided_slice %33 {offsets = [0, 0], sizes = [8, 16], strides = [1, 1]} : vector<9x16xf32> to vector<8x16xf32>
      %37 = vector.broadcast %35 : vector<1x16xf32> to vector<8x16xf32>
      %38 = arith.mulf %36, %37 : vector<8x16xf32>
      %c0_23 = arith.constant 0 : index
      %c0_24 = arith.constant 0 : index
      %c0_25 = arith.constant 0 : index
      %39 = vector.load %arg7[%c0_23, %c0_24, %c0_25] : memref<1x8x16xf32, #tpu.memory_space<vmem>>, vector<1x8x16xf32>
      %40 = vector.shape_cast %39 : vector<1x8x16xf32> to vector<8x16xf32>
      %41 = vector.shape_cast %38 : vector<8x16xf32> to vector<1x8x16xf32>
      tpu.vector_store %arg7[%c0_23, %c0_24, %c0_25], %41 {strides = array<i32>} : memref<1x8x16xf32, #tpu.memory_space<vmem>>, vector<1x8x16xf32>,
    } else {
    }
    return
  }
  func.func @transform_0(%arg0: i32, %arg1: i32, %arg2: i32, %arg3: i32) -> (i32, i32, i32) {
    %c3_i32 = arith.constant 3 : i32
    %0 = arith.muli %arg0, %c3_i32 : i32
    %c2_i32 = arith.constant 2 : i32
    %1 = arith.muli %0, %c2_i32 : i32
    %2 = arith.addi %1, %arg1 : i32
    %c0_i32 = arith.constant 0 : i32
    %c0_i32_0 = arith.constant 0 : i32
    return %2, %c0_i32, %arg2 : i32, i32, i32
  }
  func.func @transform_1(%arg0: i32, %arg1: i32, %arg2: i32, %arg3: i32) -> (i32, i32, i32) {
    %c3_i32 = arith.constant 3 : i32
    %0 = arith.muli %arg0, %c3_i32 : i32
    %c2_i32 = arith.constant 2 : i32
    %1 = arith.muli %0, %c2_i32 : i32
    %c2_i32_0 = arith.constant 2 : i32
    %2 = arith.addi %1, %c2_i32_0 : i32
    %3 = arith.addi %2, %arg1 : i32
    %c0_i32 = arith.constant 0 : i32
    %c0_i32_1 = arith.constant 0 : i32
    return %3, %c0_i32, %arg3 : i32, i32, i32
  }
  func.func @transform_2(%arg0: i32, %arg1: i32, %arg2: i32, %arg3: i32) -> (i32, i32, i32) {
    %c3_i32 = arith.constant 3 : i32
    %0 = arith.muli %arg0, %c3_i32 : i32
    %c2_i32 = arith.constant 2 : i32
    %1 = arith.muli %0, %c2_i32 : i32
    %c4_i32 = arith.constant 4 : i32
    %2 = arith.addi %1, %c4_i32 : i32
    %3 = arith.addi %2, %arg1 : i32
    %c0_i32 = arith.constant 0 : i32
    %c0_i32_0 = arith.constant 0 : i32
    return %3, %c0_i32, %arg3 : i32, i32, i32
  }
  func.func @transform_3(%arg0: i32, %arg1: i32, %arg2: i32, %arg3: i32) -> (i32, i32, i32) {
    %c2_i32 = arith.constant 2 : i32
    %0 = arith.muli %arg0, %c2_i32 : i32
    %1 = arith.addi %0, %arg1 : i32
    %c0_i32 = arith.constant 0 : i32
    %c0_i32_0 = arith.constant 0 : i32
    return %1, %c0_i32, %arg2 : i32, i32, i32
  }
}

</mosaic_0001>

<llo_original>
// kernel: tpu_custom_call.1
$region0: #{tpu_custom_call.1}
  #allocation0 [shape = 'u32[]', space=smem, size = 0x4, offset = 0x4, fixed_abs, tag = 'smem constant byte address 0x4 - core index']
  #allocation1 [shape = 'u32[144,128]{1,0:T(1,128)}', space=vmem, size = 0x12000, scoped, tag = 'internal scratch']
  #allocation2 [shape = 'f32[1,16]{1,0:T(1,128)}', space=vmem, size = 0x200, scoped, tag = 'scratch operand']
  #allocation3 [shape = 'f32[9,16]{1,0:T(8,128)}', space=vmem, size = 0x2000, scoped, tag = 'scratch operand']
  #allocation4 [shape = 'bf16[8,16]{1,0:T(8,128)(2,1)}', space=vmem, size = 0x800, scoped, tag = 'scratch operand']
  %s0 = inlined_call_operand.hbm [shape: f32[12,8,16], index: 0, kind: input, shape index: {}]
  %s1 = inlined_call_operand.hbm [shape: f32[12,8,16], index: 1, kind: input, shape index: {}]
  %s2 = inlined_call_operand.hbm [shape: f32[12,8,16], index: 2, kind: input, shape index: {}]
  %s3 = inlined_call_operand.hbm [shape: f32[4,8,16], index: 3, kind: output, shape index: {}]
  %s4 = sld [smem:[#allocation0]]
  $region65: #{tpu_custom_call.1} parent=0
    _
  %s6 = ssub.s32 1, %s4
  %s7 = scalar_select 0, %s6, %s4
  $region1: #{tpu_custom_call.1} parent=0
    #allocation5 [shape = 'u8[8192]{0}', space=vmem, size = 0x2000, scoped, tag = 'input window, operand 0']
    #allocation6 [shape = 's32[2]{0}', space=sflag, size = 0x8, scoped, tag = 'scoped memory for tpu_custom_call.1']
    #allocation7 [shape = 's32[2]{0}', space=sflag, size = 0x8, scoped, tag = 'scoped memory for tpu_custom_call.1']
    #allocation8 [shape = 'u8[8192]{0}', space=vmem, size = 0x2000, scoped, tag = 'input window, operand 1']
    #allocation9 [shape = 's32[2]{0}', space=sflag, size = 0x8, scoped, tag = 'scoped memory for tpu_custom_call.1']
    #allocation10 [shape = 'u8[8192]{0}', space=vmem, size = 0x2000, scoped, tag = 'input window, operand 2']
    #allocation11 [shape = 'u8[8192]{0}', space=vmem, size = 0x2000, scoped, tag = 'output window, operand 0']
    %8 = vsyncpa [#allocation6], 0
    %s9 = scalar_lea.sflag [#allocation6], 1
    %10 = vsyncpa %s9, 0
    %11 = vsyncpa [#allocation9], 0
    %s12 = scalar_lea.sflag [#allocation9], 1
    %13 = vsyncpa %s12, 0
    %14 = vsyncpa [#allocation7], 0
    %s15 = scalar_lea.sflag [#allocation7], 1
    %16 = vsyncpa %s15, 0
    loop: start=0, step=1, limit=6
    $region2: #{tpu_custom_call.1} parent=1 // loop_pre_header
      _
    $region3: #{tpu_custom_call.1} parent=1 // loop_header
      %s18 = sphi 0, %s22
      %p19 = scmp.ge.s32.totalorder %s18, 6
      %s25 = sphi 0, %s51
      %s26 = sphi 0, %s47
      %s27 = sphi 0, %s43
      %s28 = sphi 0, %s39
      %s29 = sphi 0, %s25
      %s30 = sphi 0, %s26
      %s31 = sphi 0, %s27
      %s32 = sphi 0, %s28
      %s33 = sphi 0, %s29
      %s34 = sphi 0, %s30
      %s35 = sphi 0, %s31
      %s36 = sphi 0, %s32
      %s60 = sphi 0, %s62
      %s63 = sphi 0, %s60
      %s64 = sphi 0, %s63
      %s80 = sphi 0, %s64
      %s94 = sphi 0, %s96
      %s97 = sphi 0, %s94
      %s98 = sphi 0, %s97
      %s114 = sphi 0, %s98
      %s128 = sphi 0, %s130
      %s131 = sphi 0, %s128
      %s132 = sphi 0, %s131
      %s148 = sphi 0, %s132
      %s160 = sphi 0, %s162
      %s163 = sphi 0, %s160
      %s164 = sphi 0, %s163
      %s180 = sphi 0, %s164
    $region4: #{tpu_custom_call.1} parent=1 // loop_header_branch
      %21 = sbr.rel (%p19) target = $region8
    $region5: #{tpu_custom_call.1} parent=1 // loop_body
      %s23 = ssub.s32 %s18, 1
      %s24 = ssub.s32 %s18, 2
      %s37 = sadd.s32 1, %s28
      %p38 = scmp.ge.s32.totalorder %s37, 1
      %s39 = scalar_select %p38, 0, %s37
      %s40 = sadd.s32 1, %s27
      %s41 = scalar_select %p38, %s40, %s27
      %p42 = scmp.ge.s32.totalorder %s41, 1
      %s43 = scalar_select %p42, 0, %s41
      %s44 = sadd.s32 1, %s26
      %s45 = scalar_select %p42, %s44, %s26
      %p46 = scmp.ge.s32.totalorder %s45, 2
      %s47 = scalar_select %p46, 0, %s45
      %s48 = sadd.s32 1, %s25
      %s49 = scalar_select %p46, %s48, %s25
      %p50 = scmp.ge.s32.totalorder %s49, 2
      %s51 = scalar_select %p50, 0, %s49
      %s52 = smul.u32 %s25, 6
      %s53 = sadd.s32 %s52, %s26
      %s54 = smul.u32 %s51, 6
      %s55 = sadd.s32 %s54, %s47
      %s56 = ssub.s32 %s53, %s55
      %s57 = ssub.s32 %s27, %s43
      %s58 = sor.u32 %s56, %s57
      %p59 = scmp.eq.s32.totalorder %s58, 0
      %s61 = sadd.s32 %s60, 1
      %s62 = scalar_select %p59, %s60, %s61
      %p65 = pneg %p59
      %p66 = scmp.eq.s32.totalorder %s18, 3
      %p67 = por %p65, %p66
      %p68 = scmp.ne.s32.totalorder %s60, %s63
      %p69 = scmp.eq.s32.totalorder %s18, 0
      %p70 = por %p68, %p69
      %p71 = scmp.ne.s32.totalorder %s60, %s63
      %p72 = scmp.eq.s32.totalorder %s23, 3
      %p73 = por %p71, %p72
      %p74 = scmp.ne.s32.totalorder %s63, %s64
      %p75 = scmp.eq.s32.totalorder %s23, 0
      %p76 = por %p74, %p75
      %p77 = scmp.ne.s32.totalorder %s63, %s64
      %p78 = scmp.eq.s32.totalorder %s24, 3
      %p79 = por %p77, %p78
      %p81 = scmp.ne.s32.totalorder %s64, %s80
      %p82 = scmp.eq.s32.totalorder %s24, 0
      %p83 = por %p81, %p82
      %s84 = smul.u32 %s25, 6
      %s85 = sadd.s32 %s84, 2
      %s86 = sadd.s32 %s85, %s26
      %s87 = smul.u32 %s51, 6
      %s88 = sadd.s32 %s87, 2
      %s89 = sadd.s32 %s88, %s47
      %s90 = ssub.s32 %s86, %s89
      %s91 = ssub.s32 %s28, %s39
      %s92 = sor.u32 %s90, %s91
      %p93 = scmp.eq.s32.totalorder %s92, 0
      %s95 = sadd.s32 %s94, 1
      %s96 = scalar_select %p93, %s94, %s95
      %p99 = pneg %p93
      %p100 = scmp.eq.s32.totalorder %s18, 3
      %p101 = por %p99, %p100
      %p102 = scmp.ne.s32.totalorder %s94, %s97
      %p103 = scmp.eq.s32.totalorder %s18, 0
      %p104 = por %p102, %p103
      %p105 = scmp.ne.s32.totalorder %s94, %s97
      %p106 = scmp.eq.s32.totalorder %s23, 3
      %p107 = por %p105, %p106
      %p108 = scmp.ne.s32.totalorder %s97, %s98
      %p109 = scmp.eq.s32.totalorder %s23, 0
      %p110 = por %p108, %p109
      %p111 = scmp.ne.s32.totalorder %s97, %s98
      %p112 = scmp.eq.s32.totalorder %s24, 3
      %p113 = por %p111, %p112
      %p115 = scmp.ne.s32.totalorder %s98, %s114
      %p116 = scmp.eq.s32.totalorder %s24, 0
      %p117 = por %p115, %p116
      %s118 = smul.u32 %s25, 6
      %s119 = sadd.s32 %s118, 4
      %s120 = sadd.s32 %s119, %s26
      %s121 = smul.u32 %s51, 6
      %s122 = sadd.s32 %s121, 4
      %s123 = sadd.s32 %s122, %s47
      %s124 = ssub.s32 %s120, %s123
      %s125 = ssub.s32 %s28, %s39
      %s126 = sor.u32 %s124, %s125
      %p127 = scmp.eq.s32.totalorder %s126, 0
      %s129 = sadd.s32 %s128, 1
      %s130 = scalar_select %p127, %s128, %s129
      %p133 = pneg %p127
      %p134 = scmp.eq.s32.totalorder %s18, 3
      %p135 = por %p133, %p134
      %p136 = scmp.ne.s32.totalorder %s128, %s131
      %p137 = scmp.eq.s32.totalorder %s18, 0
      %p138 = por %p136, %p137
      %p139 = scmp.ne.s32.totalorder %s128, %s131
      %p140 = scmp.eq.s32.totalorder %s23, 3
      %p141 = por %p139, %p140
      %p142 = scmp.ne.s32.totalorder %s131, %s132
      %p143 = scmp.eq.s32.totalorder %s23, 0
      %p144 = por %p142, %p143
      %p145 = scmp.ne.s32.totalorder %s131, %s132
      %p146 = scmp.eq.s32.totalorder %s24, 3
      %p147 = por %p145, %p146
      %p149 = scmp.ne.s32.totalorder %s132, %s148
      %p150 = scmp.eq.s32.totalorder %s24, 0
      %p151 = por %p149, %p150
      %s152 = smul.u32 %s25, 2
      %s153 = sadd.s32 %s152, %s26
      %s154 = smul.u32 %s51, 2
      %s155 = sadd.s32 %s154, %s47
      %s156 = ssub.s32 %s153, %s155
      %s157 = ssub.s32 %s27, %s43
      %s158 = sor.u32 %s156, %s157
      %p159 = scmp.eq.s32.totalorder %s158, 0
      %s161 = sadd.s32 %s160, 1
      %s162 = scalar_select %p159, %s160, %s161
      %p165 = pneg %p159
      %p166 = scmp.eq.s32.totalorder %s18, 3
      %p167 = por %p165, %p166
      %p168 = scmp.ne.s32.totalorder %s160, %s163
      %p169 = scmp.eq.s32.totalorder %s18, 0
      %p170 = por %p168, %p169
      %p171 = scmp.ne.s32.totalorder %s160, %s163
      %p172 = scmp.eq.s32.totalorder %s23, 3
      %p173 = por %p171, %p172
      %p174 = scmp.ne.s32.totalorder %s163, %s164
      %p175 = scmp.eq.s32.totalorder %s23, 0
      %p176 = por %p174, %p175
      %p177 = scmp.ne.s32.totalorder %s163, %s164
      %p178 = scmp.eq.s32.totalorder %s24, 3
      %p179 = por %p177, %p178
      %p181 = scmp.ne.s32.totalorder %s164, %s180
      %p182 = scmp.eq.s32.totalorder %s24, 0
      %p183 = por %p181, %p182
      %p184 = scmp.le.s32.totalorder 1, %s18
      %p185 = scmp.lt.s32.totalorder %s18, 5
      %p186 = pnand %p184, %p185
      %p187 = pneg %p186
      // Predicated region
      $region9: #{tpu_custom_call.1} parent=5 // pred_check
        _
      $region10: #{tpu_custom_call.1} parent=5 // pred_check_branch
        %189 = sbr.rel (%p186) target = $region12
      $region11: #{tpu_custom_call.1} parent=5 // pred_region
        %s190 = ssub.s32 %s18, 1
      $region12: #{tpu_custom_call.1} parent=5 // pred_fallthru
        _
      %p191 = scmp.lt.s32.totalorder %s18, 4
      // Predicated region
      $region13: #{tpu_custom_call.1} parent=5 // pred_check
        %p192 = pneg %p191
      $region14: #{tpu_custom_call.1} parent=5 // pred_check_branch
        %194 = sbr.rel (%p192) target = $region16
      $region15: #{tpu_custom_call.1} parent=5 // pred_region
        // Predicated region
        $region17: #{tpu_custom_call.1} parent=15 // pred_check
          %p195 = pneg %p70
        $region18: #{tpu_custom_call.1} parent=15 // pred_check_branch
          %197 = sbr.rel (%p195) target = $region20
        $region19: #{tpu_custom_call.1} parent=15 // pred_region
          %s198 = sand.u32 %s60, 1
          %s199 = scalar_lea.sflag [#allocation6], %s198
          %s200 = sand.u32 %s60, 1
          %s201 = smul.addr %s200, 8
          %s202 = scalar_lea.vmem [#allocation5], %s201
          %s203 = smul.u32 %s25, 6
          %s204 = sadd.s32 %s203, %s26
          %s206 = ssub.s32 128, 128
          %207 = vsyncadd %s199, %s206
          %s208 = sadd.s32 %s27, %s204
          %s209 = smul.addr %s208, 128
          %s210 = scalar_lea.hbm %s0, %s209
          %s212 = sshll.u32 %s202, 4
          %s213 = int_to_ptr.vmem [resolvable:$true] %s212
          %215 = dma.hbm_to_vmem [thread:$0]  %s210, 128, %s213, %s199
        $region20: #{tpu_custom_call.1} parent=15 // pred_fallthru
          _
        // Predicated region
        $region21: #{tpu_custom_call.1} parent=15 // pred_check
          %p216 = pneg %p104
        $region22: #{tpu_custom_call.1} parent=15 // pred_check_branch
          %218 = sbr.rel (%p216) target = $region24
        $region23: #{tpu_custom_call.1} parent=15 // pred_region
          %s219 = sand.u32 %s18, 1
          %s220 = scalar_lea.sflag [#allocation9], %s219
          %s221 = sand.u32 %s94, 1
          %s222 = smul.addr %s221, 8
          %s223 = scalar_lea.vmem [#allocation8], %s222
          %s224 = smul.u32 %s25, 6
          %s225 = sadd.s32 %s224, 2
          %s226 = sadd.s32 %s225, %s26
          %s228 = ssub.s32 128, 128
          %229 = vsyncadd %s220, %s228
          %s230 = sadd.s32 %s28, %s226
          %s231 = smul.addr %s230, 128
          %s232 = scalar_lea.hbm %s1, %s231
          %s234 = sshll.u32 %s223, 4
          %s235 = int_to_ptr.vmem [resolvable:$true] %s234
          %237 = dma.hbm_to_vmem [thread:$0]  %s232, 128, %s235, %s220
        $region24: #{tpu_custom_call.1} parent=15 // pred_fallthru
          _
        // Predicated region
        $region25: #{tpu_custom_call.1} parent=15 // pred_check
          %p238 = pneg %p138
        $region26: #{tpu_custom_call.1} parent=15 // pred_check_branch
          %240 = sbr.rel (%p238) target = $region28
        $region27: #{tpu_custom_call.1} parent=15 // pred_region
          %s241 = sand.u32 %s18, 1
          %s242 = scalar_lea.sflag [#allocation9], %s241
          %s243 = sand.u32 %s128, 1
          %s244 = smul.addr %s243, 8
          %s245 = scalar_lea.vmem [#allocation10], %s244
          %s246 = smul.u32 %s25, 6
          %s247 = sadd.s32 %s246, 4
          %s248 = sadd.s32 %s247, %s26
          %s250 = ssub.s32 128, 128
          %251 = vsyncadd %s242, %s250
          %s252 = sadd.s32 %s28, %s248
          %s253 = smul.addr %s252, 128
          %s254 = scalar_lea.hbm %s2, %s253
          %s256 = sshll.u32 %s245, 4
          %s257 = int_to_ptr.vmem [resolvable:$true] %s256
          %259 = dma.hbm_to_vmem [thread:$0]  %s254, 128, %s257, %s242
        $region28: #{tpu_custom_call.1} parent=15 // pred_fallthru
          _
      $region16: #{tpu_custom_call.1} parent=5 // pred_fallthru
        _
      %p260 = scmp.le.s32.totalorder 1, %s18
      %p261 = scmp.lt.s32.totalorder %s18, 5
      %p262 = pnand %p260, %p261
      %p263 = pneg %p262
      // Predicated region
      $region29: #{tpu_custom_call.1} parent=5 // pred_check
        _
      $region30: #{tpu_custom_call.1} parent=5 // pred_check_branch
        %265 = sbr.rel (%p262) target = $region32
      $region31: #{tpu_custom_call.1} parent=5 // pred_region
        %s266 = ssub.s32 %s18, 1
        %s267 = sand.u32 %s63, 1
        %s268 = scalar_lea.sflag [#allocation6], %s267
        %s269 = sand.u32 %s63, 1
        %s270 = smul.addr %s269, 8
        %s271 = scalar_lea.vmem [#allocation5], %s270
        // Predicated region
        $region33: #{tpu_custom_call.1} parent=31 // pred_check
          %p272 = pneg %p76
        $region34: #{tpu_custom_call.1} parent=31 // pred_check_branch
          %274 = sbr.rel (%p272) target = $region36
        $region35: #{tpu_custom_call.1} parent=31 // pred_region
          %275 = dma.done %s268, 128
        $region36: #{tpu_custom_call.1} parent=31 // pred_fallthru
          _
        %s276 = sand.u32 %s23, 1
        %s277 = scalar_lea.sflag [#allocation9], %s276
        %s278 = sand.u32 %s97, 1
        %s279 = smul.addr %s278, 8
        %s280 = scalar_lea.vmem [#allocation8], %s279
        // Predicated region
        $region37: #{tpu_custom_call.1} parent=31 // pred_check
          %p281 = pneg %p110
        $region38: #{tpu_custom_call.1} parent=31 // pred_check_branch
          %283 = sbr.rel (%p281) target = $region40
        $region39: #{tpu_custom_call.1} parent=31 // pred_region
          %284 = dma.done %s277, 128
        $region40: #{tpu_custom_call.1} parent=31 // pred_fallthru
          _
        %s285 = sand.u32 %s23, 1
        %s286 = scalar_lea.sflag [#allocation9], %s285
        %s287 = sand.u32 %s131, 1
        %s288 = smul.addr %s287, 8
        %s289 = scalar_lea.vmem [#allocation10], %s288
        // Predicated region
        $region41: #{tpu_custom_call.1} parent=31 // pred_check
          %p290 = pneg %p144
        $region42: #{tpu_custom_call.1} parent=31 // pred_check_branch
          %292 = sbr.rel (%p290) target = $region44
        $region43: #{tpu_custom_call.1} parent=31 // pred_region
          %293 = dma.done %s286, 128
        $region44: #{tpu_custom_call.1} parent=31 // pred_fallthru
          _
        %s294 = sand.u32 %s63, 1
        %s295 = scalar_lea.sflag [#allocation6], %s294
        %s296 = sand.u32 %s63, 1
        %s297 = smul.addr %s296, 8
        %s298 = scalar_lea.vmem [#allocation5], %s297
        %p299 = pneg %p76
        %p300 = pneg %p73
        %s301 = sand.u32 %s23, 1
        %s302 = scalar_lea.sflag [#allocation9], %s301
        %s303 = sand.u32 %s97, 1
        %s304 = smul.addr %s303, 8
        %s305 = scalar_lea.vmem [#allocation8], %s304
        %p306 = pneg %p110
        %p307 = pneg %p107
        %s308 = sand.u32 %s23, 1
        %s309 = scalar_lea.sflag [#allocation9], %s308
        %s310 = sand.u32 %s131, 1
        %s311 = smul.addr %s310, 8
        %s312 = scalar_lea.vmem [#allocation10], %s311
        %p313 = pneg %p144
        %p314 = pneg %p141
        %p315 = pneg %p176
        %p316 = pneg %p173
        %s317 = sand.u32 %s163, 1
        %s318 = scalar_lea.sflag [#allocation7], %s317
        %s319 = sand.u32 %s163, 1
        %s320 = smul.addr %s319, 8
        %s321 = scalar_lea.vmem [#allocation11], %s320
        %s322 = smul.u32 %s29, 6
        %s323 = sadd.s32 %s322, %s30
        %s324 = smul.u32 %s29, 6
        %s325 = sadd.s32 %s324, 2
        %s326 = sadd.s32 %s325, %s30
        %s327 = smul.u32 %s29, 6
        %s328 = sadd.s32 %s327, 4
        %s329 = sadd.s32 %s328, %s30
        %s330 = smul.u32 %s29, 2
        %s331 = sadd.s32 %s330, %s30
        %p334 = scmp.eq.s32.totalorder %s32, 0
        // Predicated region
        $region45: #{tpu_custom_call.1} parent=31 // pred_check
          %p335 = pneg %p334
        $region46: #{tpu_custom_call.1} parent=31 // pred_check_branch
          %337 = sbr.rel (%p335) target = $region48
        $region47: #{tpu_custom_call.1} parent=31 // pred_region
          %vm338 = vcmask 122880
          %339 = vst.msk [vmem:[#allocation2] sm:$0x1] %vm338, -inf
          %vm340 = vcmask 130048
          %341 = vst.msk [vmem:[#allocation3] sm:$0xff] %vm340, 0.0
          %342 = vst.msk [vmem:[#allocation3 + $0x8] sm:$0x1] %vm338, 0.0
          %v343 = vld [vmem:[%s271] sm:$0xff]
          %v344 = vmul.f32 %v343, 0.35355338
          %v345 = vpack.c.bf16 %v344, %v344
          %vm346 = vcmask 125952
          %347 = vst.msk [vmem:[#allocation4] sm:$0xf] %vm346, %v345
        $region48: #{tpu_custom_call.1} parent=31 // pred_fallthru
          _
        %v348 = vld [vmem:[#allocation4] sm:$0xf]
        %v349 = vld [vmem:[%s280] sm:$0xff]
        %v350 = vpack.c.bf16 %v349, %v349
        %v351 = vld [vmem:[%s289] sm:$0xff]
        %v352 = vpack.c.bf16 %v351, %v351
        %353 = vxpose.xlu0.c.b16.start [1/8] %v350, 128
        %354 = vxpose.xlu0.c.b16.cont [2/8] 0, 128
        %355 = vxpose.xlu0.c.b16.cont [3/8] 0, 128
        %356 = vxpose.xlu0.c.b16.cont [4/8] 0, 128
        %357 = vxpose.xlu0.c.b16.cont [5/8] 0, 128
        %358 = vxpose.xlu0.c.b16.cont [6/8] 0, 128
        %359 = vxpose.xlu0.c.b16.cont [7/8] 0, 128
        %360 = vxpose.xlu0.c.b16.end [8/8] 0, 128
        %v361 = vpop.trf.xlu0
        %v362 = vpop.trf.xlu0
        %v363 = vpop.trf.xlu0
        %v364 = vpop.trf.xlu0
        %v365 = vpop.trf.xlu0
        %v366 = vpop.trf.xlu0
        %v367 = vpop.trf.xlu0
        %v368 = vpop.trf.xlu0
        %vm369 = vcmask 64512
        %v371 = vsel %vm369, %v361, 0
        %vm373 = vcmask 1043456
        %v375 = vsel %vm373, %v348, 0
        %377 = vmatprep.subr.bf16.mxu0 0
        %378 = vmatpush1.bf16.msra.mxu0 0
        %379 = vmatprep.subr.bf16.mxu0 0
        %380 = vmatpush1.bf16.msra.mxu0 0
        %381 = vmatprep.subr.bf16.mxu0 0
        %382 = vmatpush1.bf16.msra.mxu0 0
        %383 = vmatprep.subr.bf16.mxu0 0
        %384 = vmatpush1.bf16.msra.mxu0 0
        %385 = vmatprep.subr.bf16.mxu0 0
        %386 = vmatpush1.bf16.msra.mxu0 0
        %387 = vmatprep.subr.bf16.mxu0 0
        %388 = vmatpush1.bf16.msra.mxu0 0
        %389 = vmatprep.subr.bf16.mxu0 0
        %390 = vmatpush1.bf16.msra.mxu0 0
        %391 = vmatprep.subr.bf16.mxu0 0
        %392 = vmatpush1.bf16.msra.mxu0 %v375
        %393 = vmatprep.subr.bf16.mxu0 0
        %394 = vmatpush2.bf16.msra.mxu0 0
        %395 = vmatprep.subr.bf16.mxu0 0
        %396 = vmatpush2.bf16.msra.mxu0 0
        %397 = vmatprep.subr.bf16.mxu0 0
        %398 = vmatpush2.bf16.msra.mxu0 0
        %399 = vmatprep.subr.bf16.mxu0 0
        %400 = vmatpush2.bf16.msra.mxu0 0
        %401 = vmatprep.subr.bf16.mxu0 0
        %402 = vmatpush2.bf16.msra.mxu0 0
        %403 = vmatprep.subr.bf16.mxu0 0
        %404 = vmatpush2.bf16.msra.mxu0 0
        %405 = vmatprep.subr.bf16.mxu0 0
        %406 = vmatpush2.bf16.msra.mxu0 0
        %407 = vmatprep.subr.bf16.mxu0 0
        %408 = vmatpush2.bf16.msra.mxu0 0
        %409 = vmatprep.mubr.bf16.mxu0 0
        %410 = vmatmul.mubr.bf16.gmra.mxu0 %v371
        %v411 = vpop.f32.mrf.mxu0
        %v412 = vadd.f32 0.0, %v411
        %v413 = vpop.f32.mrf.mxu0
        %v414 = vpop.f32.mrf.mxu0
        %v415 = vadd.f32 0.0, %v414
        %v416 = vpop.f32.mrf.mxu0
        %417 = vdwg.mxu0
        %v418 = vld [vmem:[#allocation2] sm:$0x1]
        %vm419 = vcmask 130048
        %v420 = vsel %vm419, %v412, -inf
        %v421 = vsel %vm419, %v415, -inf
        %v422 = vmax.f32 %v420, %v421
        %v423 = vrot.slane %v422, 4
        %v424 = vmax.f32 %v422, %v423
        %v425 = vrot.slane %v424, 2
        %v426 = vmax.f32 %v424, %v425
        %v427 = vrot.slane %v426, 1
        %v428 = vmax.f32 %v426, %v427
        %v429 = vmax.f32 %v418, %v428
        %v430 = vsub.f32 %v418, %v429
        %v431 = vmul.f32 %v430, 1.442695
        %v432 = vpow.pop %v431
        %v434 = vlaneseq
        %v435 = vshrl.u32 %v434, 7
        %v436 = vsub.s32 0, %v435
        %v437 = vrot.slane %v429, %v436
        %v439 = vsub.f32 %v412, %v437
        %v440 = vsub.f32 %v415, %v437
        %v441 = vmul.f32 %v439, 1.442695
        %v442 = vpow.pop %v441
        %v443 = vmul.f32 %v440, 1.442695
        %v444 = vpow.pop %v443
        %v447 = vsel %vm373, %v352, 1065369472
        %v448 = vpack.c.bf16 %v444, %v442
        %v449 = vsel %vm419, %v447, 0
        %451 = vmatprep.subr.bf16.mxu0 0
        %452 = vmatpush1.bf16.msra.mxu0 0
        %453 = vmatprep.subr.bf16.mxu0 0
        %454 = vmatpush1.bf16.msra.mxu0 0
        %455 = vmatprep.subr.bf16.mxu0 0
        %456 = vmatpush1.bf16.msra.mxu0 0
        %457 = vmatprep.subr.bf16.mxu0 0
        %458 = vmatpush1.bf16.msra.mxu0 0
        %459 = vmatprep.subr.bf16.mxu0 0
        %460 = vmatpush1.bf16.msra.mxu0 0
        %461 = vmatprep.subr.bf16.mxu0 0
        %462 = vmatpush1.bf16.msra.mxu0 0
        %463 = vmatprep.subr.bf16.mxu0 0
        %464 = vmatpush1.bf16.msra.mxu0 0
        %465 = vmatprep.subr.bf16.mxu0 0
        %466 = vmatpush1.bf16.msra.mxu0 %v448
        %467 = vmatprep.subr.bf16.mxu0 0
        %468 = vmatpush2.bf16.msra.mxu0 0
        %469 = vmatprep.subr.bf16.mxu0 0
        %470 = vmatpush2.bf16.msra.mxu0 0
        %471 = vmatprep.subr.bf16.mxu0 0
        %472 = vmatpush2.bf16.msra.mxu0 0
        %473 = vmatprep.subr.bf16.mxu0 0
        %474 = vmatpush2.bf16.msra.mxu0 0
        %475 = vmatprep.subr.bf16.mxu0 0
        %476 = vmatpush2.bf16.msra.mxu0 0
        %477 = vmatprep.subr.bf16.mxu0 0
        %478 = vmatpush2.bf16.msra.mxu0 0
        %479 = vmatprep.subr.bf16.mxu0 0
        %480 = vmatpush2.bf16.msra.mxu0 0
        %481 = vmatprep.subr.bf16.mxu0 0
        %482 = vmatpush2.bf16.msra.mxu0 0
        %483 = vmatprep.mubr.bf16.mxu0 0
        %484 = vmatmul.mubr.bf16.gmra.mxu0 %v449
        %v485 = vpop.f32.mrf.mxu0
        %v486 = vadd.f32 0.0, %v485
        %v487 = vpop.f32.mrf.mxu0
        %v488 = vpop.f32.mrf.mxu0
        %v489 = vadd.f32 0.0, %v488
        %v490 = vpop.f32.mrf.mxu0
        %491 = vdwg.mxu0
        %v492 = vld [vmem:[#allocation3] sm:$0xff]
        %v493 = vld [vmem:[#allocation3 + $0x8] sm:$0x1]
        %v495 = vlaneseq
        %v496 = vshrl.u32 %v495, 7
        %v497 = vsub.s32 0, %v496
        %v498 = vrot.slane %v432, %v497
        %v500 = vmul.f32 %v498, %v492
        %v501 = vmul.f32 %v498, %v493
        %v502 = vadd.f32 %v500, %v486
        %v503 = vadd.f32 %v501, %v489
        %504 = vst.msk [vmem:[#allocation3] sm:$0xff] %vm419, %v502
        %vm505 = vcmask 122880
        %506 = vst.msk [vmem:[#allocation3 + $0x8] sm:$0x1] %vm505, %v503
        %507 = vst.msk [vmem:[#allocation2] sm:$0x1] %vm505, %v429
        // Predicated region
        $region49: #{tpu_custom_call.1} parent=31 // pred_check
          %p508 = pneg %p334
        $region50: #{tpu_custom_call.1} parent=31 // pred_check_branch
          %510 = sbr.rel (%p508) target = $region52
        $region51: #{tpu_custom_call.1} parent=31 // pred_region
          %v511 = vld [vmem:[#allocation3] sm:$0xff]
          %v512 = vld [vmem:[#allocation3 + $0x8] sm:$0x1]
          %v513 = vrcp.pop %v512
          %v514 = vlaneseq
          %v515 = vshrl.u32 %v514, 7
          %v516 = vsub.s32 0, %v515
          %v517 = vrot.slane %v513, %v516
          %v518 = vmul.f32 %v511, %v517
          %519 = vst.msk [vmem:[%s321] sm:$0xff] %vm419, %v518
        $region52: #{tpu_custom_call.1} parent=31 // pred_fallthru
          _
        %s520 = sand.u32 %s163, 1
        %s521 = scalar_lea.sflag [#allocation7], %s520
        %s522 = sand.u32 %s163, 1
        %s523 = smul.addr %s522, 8
        %s524 = scalar_lea.vmem [#allocation11], %s523
        // Predicated region
        $region53: #{tpu_custom_call.1} parent=31 // pred_check
          %p525 = pneg %p173
        $region54: #{tpu_custom_call.1} parent=31 // pred_check_branch
          %527 = sbr.rel (%p525) target = $region56
        $region55: #{tpu_custom_call.1} parent=31 // pred_region
          %s528 = smul.u32 %s29, 2
          %s529 = sadd.s32 %s528, %s30
          %s531 = ssub.s32 128, 128
          %532 = vsyncadd %s521, %s531
          %s533 = sadd.s32 %s31, %s529
          %s534 = smul.addr %s533, 128
          %s535 = scalar_lea.hbm %s3, %s534
          %s537 = sshll.u32 %s524, 4
          %s538 = int_to_ptr.vmem [resolvable:$true] %s537
          %540 = dma.vmem_to_hbm [thread:$0]  %s538, 128, %s535, %s521
        $region56: #{tpu_custom_call.1} parent=31 // pred_fallthru
          _
      $region32: #{tpu_custom_call.1} parent=5 // pred_fallthru
        _
      %p541 = scmp.le.s32.totalorder 2, %s18
      // Predicated region
      $region57: #{tpu_custom_call.1} parent=5 // pred_check
        %p542 = pneg %p541
      $region58: #{tpu_custom_call.1} parent=5 // pred_check_branch
        %544 = sbr.rel (%p542) target = $region60
      $region59: #{tpu_custom_call.1} parent=5 // pred_region
        %s545 = ssub.s32 %s18, 2
        // Predicated region
        $region61: #{tpu_custom_call.1} parent=59 // pred_check
          %p546 = pneg %p179
        $region62: #{tpu_custom_call.1} parent=59 // pred_check_branch
          %548 = sbr.rel (%p546) target = $region64
        $region63: #{tpu_custom_call.1} parent=59 // pred_region
          %s549 = sand.u32 %s164, 1
          %s550 = scalar_lea.sflag [#allocation7], %s549
          %s551 = sand.u32 %s164, 1
          %s552 = smul.addr %s551, 8
          %s553 = scalar_lea.vmem [#allocation11], %s552
          %554 = dma.done %s550, 128
        $region64: #{tpu_custom_call.1} parent=59 // pred_fallthru
          _
      $region60: #{tpu_custom_call.1} parent=5 // pred_fallthru
        _
    $region6: #{tpu_custom_call.1} parent=1 // loop_footer
      %s22 = sadd.s32 1, %s18
    $region7: #{tpu_custom_call.1} parent=1 // loop_footer_branch
      %17 = sbr.rel target = $region3
    $region8: #{tpu_custom_call.1} parent=1 // loop_exit
      _
    %555 = vsyncpa [#allocation6], 1
    %s556 = scalar_lea.sflag [#allocation6], 1
    %557 = vsyncpa %s556, 1
    %558 = vsyncpa [#allocation9], 1
    %s559 = scalar_lea.sflag [#allocation9], 1
    %560 = vsyncpa %s559, 1
    %561 = vsyncpa [#allocation7], 1
    %s562 = scalar_lea.sflag [#allocation7], 1
    %563 = vsyncpa %s562, 1

</llo_original>
